<compile_context>
chip_gen: v6e
topology: v6e:2x2x1
jax: 0.10.0
libtpu: 0.0.40
codegen_flags: <defaults>
</compile_context>

<pallas_src>
import jax
import jax.numpy as jnp
from jax.experimental import pallas as pl
from jax.experimental.pallas import tpu as pltpu


# ---------------------------------------------------------------------------
# Fused Pallas kernel:
#   (M_tile, Kp) x (Kp, Chidp)        bf16 -> f32 acc   (3x3 convs, all heads)
#   + shift, SiLU                     f32 elementwise
#   (M_tile, Chidp) x (Chidp, Coutp)  bf16 -> f32 acc   (block-diag 1x1 heads)
#   + bias                            f32
# All dims are padded to multiples of 128 -> clean vreg tiling, lane-dense out.
# ---------------------------------------------------------------------------
def _fused_kernel(xc_ref, w3_ref, shift_ref, w1_ref, b1_ref, out_ref):
    # 3x3 conv for all three branches as one MXU matmul (bf16 operands, f32 acc).
    h = jnp.dot(xc_ref[...], w3_ref[...], preferred_element_type=jnp.float32)
    # Fused BatchNorm shift (scale already folded into w3) + SiLU, in f32
    # (v5e has no bf16 VPU/EUP; padded hidden lanes stay exactly 0).
    h = h + shift_ref[...]
    h = h * jax.nn.sigmoid(h)
    # Block-diagonal 1x1 heads (bf16 MXU matmul) + f32 bias.
    out_ref[...] = (
        jnp.dot(h.astype(jnp.bfloat16), w1_ref[...],
                preferred_element_type=jnp.float32)
        + b1_ref[...]
    )


def fused_predictor(x_cols, w3_fused, shift_fused, w1_bd, b1_fused, c_out,
                    *, row_tile=None):
    """x_cols: (M, K) bf16 im2col patches (K may be < padded K of w3_fused).

    Returns (M, c_out) f32."""
    M, K = x_cols.shape
    Kp, Chidp = w3_fused.shape          # already padded to multiples of 128
    Coutp = w1_bd.shape[1]              # already padded to multiple of 128

    if row_tile is None:
        # Small demo sizes: one 128-row tile.  Real feature maps: big tiles so
        # the grid pipelines / shards across TensorCores and fills the MXU.
        row_tile = 128 if M <= 256 else 512

    num_tiles = pl.cdiv(M, row_tile)
    Mp = num_tiles * row_tile
    pad_m, pad_k = Mp - M, Kp - K
    if pad_m or pad_k:
        x_cols = jnp.pad(x_cols, ((0, pad_m), (0, pad_k)))

    x_bf = x_cols.astype(jnp.bfloat16)
    w3_bf = w3_fused.astype(jnp.bfloat16)
    w1_bf = w1_bd.astype(jnp.bfloat16)

    out = pl.pallas_call(
        _fused_kernel,
        out_shape=jax.ShapeDtypeStruct((Mp, Coutp), jnp.float32),
        grid=(num_tiles,),
        in_specs=[
            pl.BlockSpec((row_tile, Kp), lambda i: (i, 0)),
            pl.BlockSpec((Kp, Chidp), lambda i: (0, 0)),
            pl.BlockSpec((1, Chidp), lambda i: (0, 0)),
            pl.BlockSpec((Chidp, Coutp), lambda i: (0, 0)),
            pl.BlockSpec((1, Coutp), lambda i: (0, 0)),
        ],
        out_specs=pl.BlockSpec((row_tile, Coutp), lambda i: (i, 0)),
        compiler_params=pltpu.CompilerParams(dimension_semantics=("parallel",)),
    )(x_bf, w3_bf, shift_fused, w1_bf, b1_fused)
    # Slice padded rows / padded (zero) output channels in the wrapper.
    return out[:M, :c_out]


# ---------------------------------------------------------------------------
# Wrapper-side glue: im2col, parameter fusion + padding, layout plumbing
# ---------------------------------------------------------------------------
def _round_up(x, m):
    return ((x + m - 1) // m) * m


def _im2col_3x3(x_nhwc):
    """(B, H, W, C) -> (B*H*W, 9*C) patches for a 3x3 SAME conv (kh, kw, c order)."""
    # TODO(synk): for production feature-map sizes, move this 3x3 halo gather
    # into the kernel (overlapping row-tile index_map + 9 shifted dots) so the
    # 9x-expanded patch matrix never hits HBM.
    B, H, W, C = x_nhwc.shape
    xp = jnp.pad(x_nhwc, ((0, 0), (1, 1), (1, 1), (0, 0)))
    cols = [xp[:, kh:kh + H, kw:kw + W, :] for kh in range(3) for kw in range(3)]
    return jnp.concatenate(cols, axis=-1).reshape(B * H * W, 9 * C)


def _block_diag(blocks):
    rows = sum(b.shape[0] for b in blocks)
    cols = sum(b.shape[1] for b in blocks)
    out = jnp.zeros((rows, cols), jnp.float32)
    r = c = 0
    for b in blocks:
        out = out.at[r:r + b.shape[0], c:c + b.shape[1]].set(b)
        r += b.shape[0]
        c += b.shape[1]
    return out


def fuse_params(params, *, lane=128):
    """Fuse reg/obj/cls branch params (output order matches torch.cat([reg,obj,cls]))
    and zero-pad every matmul dimension up to a multiple of `lane`."""
    order = ("reg", "obj", "cls")
    w3_list, shift_list, w1_list, b1_list = [], [], [], []
    for name in order:
        w3, shift, w1, b1 = params[name]
        kh, kw, cin, chid = w3.shape
        w3_list.append(w3.reshape(kh * kw * cin, chid))   # (9*Cin, Cin), (kh,kw,c) rows
        shift_list.append(shift)                          # (1, Cin)
        w1_list.append(w1)                                # (Cin, Cout_branch)
        b1_list.append(b1)                                # (1, Cout_branch)
    w3_fused = jnp.concatenate(w3_list, axis=1)           # (K, Chid)
    shift_fused = jnp.concatenate(shift_list, axis=1)     # (1, Chid)
    w1_bd = _block_diag(w1_list)                          # (Chid, Cout)
    b1_fused = jnp.concatenate(b1_list, axis=1)           # (1, Cout)

    K, Chid = w3_fused.shape
    Cout = w1_bd.shape[1]
    Kp, Chidp, Coutp = _round_up(K, lane), _round_up(Chid, lane), _round_up(Cout, lane)

    # Zero padding keeps the math identical: padded x_cols lanes hit zero w3
    # rows, padded hidden channels are 0 (shift 0, SiLU(0)=0) and feed zero
    # w1_bd rows, padded output channels are sliced off in the wrapper.
    w3_fused = jnp.pad(w3_fused, ((0, Kp - K), (0, Chidp - Chid)))
    shift_fused = jnp.pad(shift_fused, ((0, 0), (0, Chidp - Chid)))
    w1_bd = jnp.pad(w1_bd, ((0, Chidp - Chid), (0, Coutp - Cout)))
    b1_fused = jnp.pad(b1_fused, ((0, 0), (0, Coutp - Cout)))
    return w3_fused, shift_fused, w1_bd, b1_fused, Cout


def task_aligned_predictor(x_nchw, params):
    """Matches TaskAlignedPredictor.forward: NCHW in -> NCHW out, cat([reg,obj,cls])."""
    x = jnp.transpose(x_nchw, (0, 2, 3, 1))               # NCHW -> NHWC
    B, H, W, Cin = x.shape
    # Build patches directly in bf16 so only one (half-size) copy hits HBM;
    # numerically identical to casting the patch matrix afterwards.
    x_cols = _im2col_3x3(x.astype(jnp.bfloat16))          # (B*H*W, 9*Cin) bf16
    w3_fused, shift_fused, w1_bd, b1_fused, c_out = fuse_params(params)
    out = fused_predictor(x_cols, w3_fused, shift_fused, w1_bd, b1_fused, c_out)
    out = out.reshape(B, H, W, c_out)                     # unflatten in the wrapper
    # TODO(synk): callers that can consume NHWC should skip this final relayout.
    return jnp.transpose(out, (0, 3, 1, 2))               # NHWC -> NCHW


# ---------------------------------------------------------------------------
# Parameter construction (deterministic, PyTorch-shaped; BN scale folded in)
# ---------------------------------------------------------------------------
def make_branch_params(key, cin, cout):
    k1, k2, k3 = jax.random.split(key, 3)
    w3 = jax.random.normal(k1, (3, 3, cin, cin), jnp.float32) * 0.1    # HWIO
    w1 = jax.random.normal(k2, (cin, cout), jnp.float32) * 0.1          # 1x1 conv (Cin, Cout)
    b1 = jax.random.normal(k3, (1, cout), jnp.float32) * 0.1
    # BatchNorm2d inference with default init: gamma=1, beta=0, mean=0, var=1, eps=1e-5
    eps = 1e-5
    gamma = jnp.ones((cin,), jnp.float32)
    beta = jnp.zeros((cin,), jnp.float32)
    mean = jnp.zeros((cin,), jnp.float32)
    var = jnp.ones((cin,), jnp.float32)
    inv = gamma / jnp.sqrt(var + eps)
    w3 = w3 * inv.reshape(1, 1, 1, cin)                   # fold BN scale into conv weight
    shift = (beta - mean * inv).reshape(1, cin)           # remaining BN shift
    return w3, shift, w1, b1


# ---------------------------------------------------------------------------
# Pure-JAX f32 reference for correctness checking
# ---------------------------------------------------------------------------
def _ref_branch(x_nhwc, w3, shift, w1, b1):
    y = jax.lax.conv_general_dilated(
        x_nhwc, w3, window_strides=(1, 1), padding="SAME",
        dimension_numbers=("NHWC", "HWIO", "NHWC"))
    y = y + shift.reshape(1, 1, 1, -1)
    y = y * jax.nn.sigmoid(y)
    return jnp.einsum("bhwc,cd->bhwd", y, w1) + b1.reshape(1, 1, 1, -1)


def _ref_forward(x_nchw, params):
    x = jnp.transpose(x_nchw, (0, 2, 3, 1))
    reg = _ref_branch(x, *params["reg"])
    obj = _ref_branch(x, *params["obj"])
    cls = _ref_branch(x, *params["cls"])
    out = jnp.concatenate([reg, obj, cls], axis=-1)
    return jnp.transpose(out, (0, 3, 1, 2))


if __name__ == "__main__":
    B, Cin, H, W = 2, 32, 8, 8
    num_classes, num_anchors = 8, 3

    key = jax.random.PRNGKey(0)
    kx, kc, kr, ko = jax.random.split(key, 4)
    x = jax.random.normal(kx, (B, Cin, H, W), jnp.float32)

    params = {
        "cls": make_branch_params(kc, Cin, num_anchors * num_classes),
        "reg": make_branch_params(kr, Cin, num_anchors * 4),
        "obj": make_branch_params(ko, Cin, num_anchors),
    }

    out = task_aligned_predictor(x, params)
    out = jax.block_until_ready(out)

    expected_channels = num_anchors * (4 + 1 + num_classes)
    assert out.shape == (B, expected_channels, H, W), out.shape

    ref = jax.block_until_ready(_ref_forward(x, params))
    # bf16 matmul operands (f32 accumulation) -> loosen tolerance vs f32 reference.
    assert jnp.allclose(out, ref, rtol=3e-2, atol=3e-2), float(jnp.max(jnp.abs(out - ref)))

    print("KERNEL_OK")
</pallas_src>

<mosaic_0001>
module attributes {stable_mosaic.version = 11 : i64} {
  func.func @_fused_kernel(%arg0: i32, %arg1: memref<128x384xbf16, #tpu.memory_space<vmem>>, %arg2: memref<384x128xbf16, #tpu.memory_space<vmem>>, %arg3: memref<1x128xf32, #tpu.memory_space<vmem>>, %arg4: memref<128x128xbf16, #tpu.memory_space<vmem>>, %arg5: memref<1x128xf32, #tpu.memory_space<vmem>>, %arg6: memref<128x128xf32, #tpu.memory_space<vmem>>) attributes {dimension_semantics = [#tpu.dimension_semantics<parallel>], iteration_bounds = array<i64: 1>, scalar_prefetch = 0 : i64, scratch_operands = 0 : i64, tpu.core_type = #tpu.core_type<tc>, window_params = [{transform_indices = @transform_0, window_bounds = array<i64: 128, 384>}, {pipeline_mode = #tpu.pipeline_mode<synchronous>, transform_indices = @transform_1, window_bounds = array<i64: 384, 128>}, {pipeline_mode = #tpu.pipeline_mode<synchronous>, transform_indices = @transform_2, window_bounds = array<i64: 1, 128>}, {pipeline_mode = #tpu.pipeline_mode<synchronous>, transform_indices = @transform_3, window_bounds = array<i64: 128, 128>}, {pipeline_mode = #tpu.pipeline_mode<synchronous>, transform_indices = @transform_4, window_bounds = array<i64: 1, 128>}, {transform_indices = @transform_5, window_bounds = array<i64: 128, 128>}]} {
    %c0 = arith.constant 0 : index
    %c0_0 = arith.constant 0 : index
    %0 = vector.load %arg1[%c0, %c0_0] : memref<128x384xbf16, #tpu.memory_space<vmem>>, vector<128x384xbf16>
    %c0_1 = arith.constant 0 : index
    %c0_2 = arith.constant 0 : index
    %1 = vector.load %arg2[%c0_1, %c0_2] : memref<384x128xbf16, #tpu.memory_space<vmem>>, vector<384x128xbf16>
    %cst = arith.constant dense<0.000000e+00> : vector<128x128xf32>
    %2 = tpu.matmul %0, %1, %cst {dimension_numbers = #tpu.dot_dimension_numbers<[1], [0], [0], [1], [0, 0, 1, 1], [], []>} : vector<128x384xbf16>, vector<384x128xbf16>, vector<128x128xf32> -> vector<128x128xf32>
    %c0_3 = arith.constant 0 : index
    %c0_4 = arith.constant 0 : index
    %3 = vector.load %arg3[%c0_3, %c0_4] : memref<1x128xf32, #tpu.memory_space<vmem>>, vector<1x128xf32>
    %4 = vector.broadcast %3 : vector<1x128xf32> to vector<128x128xf32>
    %5 = arith.addf %2, %4 : vector<128x128xf32>
    %6 = arith.negf %5 : vector<128x128xf32>
    %7 = math.exp %6 : vector<128x128xf32>
    %cst_5 = arith.constant 1.000000e+00 : f32
    %8 = vector.broadcast %cst_5 : f32 to vector<128x128xf32>
    %9 = arith.addf %8, %7 : vector<128x128xf32>
    %10 = arith.divf %8, %9 : vector<128x128xf32>
    %11 = arith.mulf %5, %10 : vector<128x128xf32>
    %12 = arith.truncf %11 : vector<128x128xf32> to vector<128x128xbf16>
    %c0_6 = arith.constant 0 : index
    %c0_7 = arith.constant 0 : index
    %13 = vector.load %arg4[%c0_6, %c0_7] : memref<128x128xbf16, #tpu.memory_space<vmem>>, vector<128x128xbf16>
    %cst_8 = arith.constant dense<0.000000e+00> : vector<128x128xf32>
    %14 = tpu.matmul %12, %13, %cst_8 {dimension_numbers = #tpu.dot_dimension_numbers<[1], [0], [0], [1], [0, 0, 1, 1], [], []>} : vector<128x128xbf16>, vector<128x128xbf16>, vector<128x128xf32> -> vector<128x128xf32>
    %c0_9 = arith.constant 0 : index
    %c0_10 = arith.constant 0 : index
    %15 = vector.load %arg5[%c0_9, %c0_10] : memref<1x128xf32, #tpu.memory_space<vmem>>, vector<1x128xf32>
    %16 = vector.broadcast %15 : vector<1x128xf32> to vector<128x128xf32>
    %17 = arith.addf %14, %16 : vector<128x128xf32>
    %c0_11 = arith.constant 0 : index
    %c0_12 = arith.constant 0 : index
    %18 = vector.load %arg6[%c0_11, %c0_12] : memref<128x128xf32, #tpu.memory_space<vmem>>, vector<128x128xf32>
    tpu.vector_store %arg6[%c0_11, %c0_12], %17 {strides = array<i32>} : memref<128x128xf32, #tpu.memory_space<vmem>>, vector<128x128xf32>,
    return
  }
  func.func @transform_0(%arg0: i32) -> (i32, i32) {
    %c0_i32 = arith.constant 0 : i32
    %c0_i32_0 = arith.constant 0 : i32
    return %arg0, %c0_i32 : i32, i32
  }
  func.func @transform_1(%arg0: i32) -> (i32, i32) {
    %c0_i32 = arith.constant 0 : i32
    %c0_i32_0 = arith.constant 0 : i32
    %c0_i32_1 = arith.constant 0 : i32
    return %c0_i32, %c0_i32_0 : i32, i32
  }
  func.func @transform_2(%arg0: i32) -> (i32, i32) {
    %c0_i32 = arith.constant 0 : i32
    %c0_i32_0 = arith.constant 0 : i32
    %c0_i32_1 = arith.constant 0 : i32
    return %c0_i32, %c0_i32_0 : i32, i32
  }
  func.func @transform_3(%arg0: i32) -> (i32, i32) {
    %c0_i32 = arith.constant 0 : i32
    %c0_i32_0 = arith.constant 0 : i32
    %c0_i32_1 = arith.constant 0 : i32
    return %c0_i32, %c0_i32_0 : i32, i32
  }
  func.func @transform_4(%arg0: i32) -> (i32, i32) {
    %c0_i32 = arith.constant 0 : i32
    %c0_i32_0 = arith.constant 0 : i32
    %c0_i32_1 = arith.constant 0 : i32
    return %c0_i32, %c0_i32_0 : i32, i32
  }
  func.func @transform_5(%arg0: i32) -> (i32, i32) {
    %c0_i32 = arith.constant 0 : i32
    %c0_i32_0 = arith.constant 0 : i32
    return %arg0, %c0_i32 : i32, i32
  }
}

</mosaic_0001>

<llo_original>
// kernel: tpu_custom_call.1
$region0: #{tpu_custom_call.1}
  #allocation0 [shape = 'u32[]', space=smem, size = 0x4, offset = 0x4, fixed_abs, tag = 'smem constant byte address 0x4 - core index']
  #allocation1 [shape = 'u32[144,128]{1,0:T(1,128)}', space=vmem, size = 0x12000, scoped, tag = 'internal scratch']
  %s0 = inlined_call_operand.hbm [shape: bf16[128,384], index: 0, kind: input, shape index: {}]
  %s1 = inlined_call_operand.hbm [shape: bf16[384,128], index: 1, kind: input, shape index: {}]
  %s2 = inlined_call_operand.vmem [shape: f32[1,128], index: 2, kind: input, shape index: {}]
  %s3 = inlined_call_operand.hbm [shape: bf16[128,128], index: 3, kind: input, shape index: {}]
  %s4 = inlined_call_operand.vmem [shape: f32[1,128], index: 4, kind: input, shape index: {}]
  %s5 = inlined_call_operand.hbm [shape: f32[128,128], index: 5, kind: output, shape index: {}]
  %s6 = sld [smem:[#allocation0]]
  $region42: #{tpu_custom_call.1} parent=0
    _
  %s8 = ssub.s32 1, %s6
  %s9 = scalar_select 0, %s8, %s6
  $region1: #{tpu_custom_call.1} parent=0
    #allocation2 [shape = 'u8[98304]{0}', space=vmem, size = 0x18000, scoped, tag = 'input window, operand 0, single buffered']
    #allocation3 [shape = 's32[1]{0}', space=sflag, size = 0x4, scoped, tag = 'scoped memory for tpu_custom_call.1']
    #allocation4 [shape = 's32[1]{0}', space=sflag, size = 0x4, scoped, tag = 'scoped memory for tpu_custom_call.1']
    #allocation5 [shape = 'u8[98304]{0}', space=vmem, size = 0x18000, scoped, tag = 'input window, operand 1, single buffered']
    #allocation6 [shape = 's32[1]{0}', space=sflag, size = 0x4, scoped, tag = 'scoped memory for tpu_custom_call.1']
    #allocation7 [shape = 'u8[32768]{0}', space=vmem, size = 0x8000, scoped, tag = 'input window, operand 3, single buffered']
    #allocation8 [shape = 'u8[65536]{0}', space=vmem, size = 0x10000, scoped, tag = 'output window, operand 0, single buffered']
    %10 = vsyncpa [#allocation3], 0
    %11 = vsyncpa [#allocation6], 0
    %12 = vsyncpa [#allocation4], 0
    // Predicated region
    $region2: #{tpu_custom_call.1} parent=1 // pred_check
      _
    $region3: #{tpu_custom_call.1} parent=1 // pred_check_branch
      %14 = sbr.rel (0) target = $region5
    $region4: #{tpu_custom_call.1} parent=1 // pred_region
      %s16 = ssub.s32 3072, 3072
      %17 = vsyncadd [#allocation3], %s16
      %s18 = sshll.u32 [#allocation2], 4
      %s19 = int_to_ptr.vmem [resolvable:$true] %s18
      %24 = dma.hbm_to_vmem [thread:$0]  %s0, 3072, %s19, [#allocation3], 192, 192, 12
    $region5: #{tpu_custom_call.1} parent=1 // pred_fallthru
      _
    // Predicated region
    $region6: #{tpu_custom_call.1} parent=1 // pred_check
      _
    $region7: #{tpu_custom_call.1} parent=1 // pred_check_branch
      %26 = sbr.rel (0) target = $region9
    $region8: #{tpu_custom_call.1} parent=1 // pred_region
      %s28 = ssub.s32 3072, 3072
      %29 = vsyncadd [#allocation6], %s28
      %s30 = sshll.u32 [#allocation5], 4
      %s31 = int_to_ptr.vmem [resolvable:$true] %s30
      %36 = dma.hbm_to_vmem [thread:$0]  %s1, 3072, %s31, [#allocation6], 64, 64, 4
    $region9: #{tpu_custom_call.1} parent=1 // pred_fallthru
      _
    // Predicated region
    $region10: #{tpu_custom_call.1} parent=1 // pred_check
      _
    $region11: #{tpu_custom_call.1} parent=1 // pred_check_branch
      %38 = sbr.rel (0) target = $region13
    $region12: #{tpu_custom_call.1} parent=1 // pred_region
      _
    $region13: #{tpu_custom_call.1} parent=1 // pred_fallthru
      _
    // Predicated region
    $region14: #{tpu_custom_call.1} parent=1 // pred_check
      _
    $region15: #{tpu_custom_call.1} parent=1 // pred_check_branch
      %40 = sbr.rel (0) target = $region17
    $region16: #{tpu_custom_call.1} parent=1 // pred_region
      %s42 = ssub.s32 1024, 1024
      %43 = vsyncadd [#allocation6], %s42
      %s44 = sshll.u32 [#allocation7], 4
      %s45 = int_to_ptr.vmem [resolvable:$true] %s44
      %50 = dma.hbm_to_vmem [thread:$0]  %s3, 1024, %s45, [#allocation6], 64, 64, 4
    $region17: #{tpu_custom_call.1} parent=1 // pred_fallthru
      _
    // Predicated region
    $region18: #{tpu_custom_call.1} parent=1 // pred_check
      _
    $region19: #{tpu_custom_call.1} parent=1 // pred_check_branch
      %52 = sbr.rel (0) target = $region21
    $region20: #{tpu_custom_call.1} parent=1 // pred_region
      _
    $region21: #{tpu_custom_call.1} parent=1 // pred_fallthru
      _
    // Predicated region
    $region22: #{tpu_custom_call.1} parent=1 // pred_check
      _
    $region23: #{tpu_custom_call.1} parent=1 // pred_check_branch
      %54 = sbr.rel (0) target = $region25
    $region24: #{tpu_custom_call.1} parent=1 // pred_region
      %55 = dma.done [#allocation3], 3072
    $region25: #{tpu_custom_call.1} parent=1 // pred_fallthru
      _
    // Predicated region
    $region26: #{tpu_custom_call.1} parent=1 // pred_check
      _
    $region27: #{tpu_custom_call.1} parent=1 // pred_check_branch
      %57 = sbr.rel (0) target = $region29
    $region28: #{tpu_custom_call.1} parent=1 // pred_region
      %58 = dma.done [#allocation6], 3072
    $region29: #{tpu_custom_call.1} parent=1 // pred_fallthru
      _
    // Predicated region
    $region30: #{tpu_custom_call.1} parent=1 // pred_check
      _
    $region31: #{tpu_custom_call.1} parent=1 // pred_check_branch
      %60 = sbr.rel (0) target = $region33
    $region32: #{tpu_custom_call.1} parent=1 // pred_region
      %61 = dma.done [#allocation6], 1024
    $region33: #{tpu_custom_call.1} parent=1 // pred_fallthru
      _
    %v63 = vld [vmem:[#allocation2] sm:$0xff]
    %v64 = vld [vmem:[#allocation2 + $0x8] sm:$0xf]
    %v65 = vld [vmem:[#allocation2 + $0xc] sm:$0xff]
    %v66 = vld [vmem:[#allocation2 + $0x14] sm:$0xf]
    %v67 = vld [vmem:[#allocation2 + $0x18] sm:$0xff]
    %v68 = vld [vmem:[#allocation2 + $0x20] sm:$0xf]
    %v69 = vld [vmem:[#allocation2 + $0x24] sm:$0xff]
    %v70 = vld [vmem:[#allocation2 + $0x2c] sm:$0xf]
    %v71 = vld [vmem:[#allocation2 + $0x30] sm:$0xff]
    %v72 = vld [vmem:[#allocation2 + $0x38] sm:$0xf]
    %v73 = vld [vmem:[#allocation2 + $0x3c] sm:$0xff]
    %v74 = vld [vmem:[#allocation2 + $0x44] sm:$0xf]
    %v75 = vld [vmem:[#allocation2 + $0x48] sm:$0xff]
    %v76 = vld [vmem:[#allocation2 + $0x50] sm:$0xf]
    %v77 = vld [vmem:[#allocation2 + $0x54] sm:$0xff]
    %v78 = vld [vmem:[#allocation2 + $0x5c] sm:$0xf]
    %v79 = vld [vmem:[#allocation2 + $0x60] sm:$0xff]
    %v80 = vld [vmem:[#allocation2 + $0x68] sm:$0xf]
    %v81 = vld [vmem:[#allocation2 + $0x6c] sm:$0xff]
    %v82 = vld [vmem:[#allocation2 + $0x74] sm:$0xf]
    %v83 = vld [vmem:[#allocation2 + $0x78] sm:$0xff]
    %v84 = vld [vmem:[#allocation2 + $0x80] sm:$0xf]
    %v85 = vld [vmem:[#allocation2 + $0x84] sm:$0xff]
    %v86 = vld [vmem:[#allocation2 + $0x8c] sm:$0xf]
    %v87 = vld [vmem:[#allocation2 + $0x90] sm:$0xff]
    %v88 = vld [vmem:[#allocation2 + $0x98] sm:$0xf]
    %v89 = vld [vmem:[#allocation2 + $0x9c] sm:$0xff]
    %v90 = vld [vmem:[#allocation2 + $0xa4] sm:$0xf]
    %v91 = vld [vmem:[#allocation2 + $0xa8] sm:$0xff]
    %v92 = vld [vmem:[#allocation2 + $0xb0] sm:$0xf]
    %v93 = vld [vmem:[#allocation2 + $0xb4] sm:$0xff]
    %v94 = vld [vmem:[#allocation2 + $0xbc] sm:$0xf]
    %v95 = vld [vmem:[#allocation5] sm:$0xf]
    %v96 = vld [vmem:[#allocation5 + $0x4] sm:$0xf]
    %v97 = vld [vmem:[#allocation5 + $0x8] sm:$0xf]
    %v98 = vld [vmem:[#allocation5 + $0xc] sm:$0xf]
    %v99 = vld [vmem:[#allocation5 + $0x10] sm:$0xf]
    %v100 = vld [vmem:[#allocation5 + $0x14] sm:$0xf]
    %v101 = vld [vmem:[#allocation5 + $0x18] sm:$0xf]
    %v102 = vld [vmem:[#allocation5 + $0x1c] sm:$0xf]
    %v103 = vld [vmem:[#allocation5 + $0x20] sm:$0xf]
    %v104 = vld [vmem:[#allocation5 + $0x24] sm:$0xf]
    %v105 = vld [vmem:[#allocation5 + $0x28] sm:$0xf]
    %v106 = vld [vmem:[#allocation5 + $0x2c] sm:$0xf]
    %v107 = vld [vmem:[#allocation5 + $0x30] sm:$0xf]
    %v108 = vld [vmem:[#allocation5 + $0x34] sm:$0xf]
    %v109 = vld [vmem:[#allocation5 + $0x38] sm:$0xf]
    %v110 = vld [vmem:[#allocation5 + $0x3c] sm:$0xf]
    %v111 = vld [vmem:[#allocation5 + $0x40] sm:$0xf]
    %v112 = vld [vmem:[#allocation5 + $0x44] sm:$0xf]
    %v113 = vld [vmem:[#allocation5 + $0x48] sm:$0xf]
    %v114 = vld [vmem:[#allocation5 + $0x4c] sm:$0xf]
    %v115 = vld [vmem:[#allocation5 + $0x50] sm:$0xf]
    %v116 = vld [vmem:[#allocation5 + $0x54] sm:$0xf]
    %v117 = vld [vmem:[#allocation5 + $0x58] sm:$0xf]
    %v118 = vld [vmem:[#allocation5 + $0x5c] sm:$0xf]
    %v119 = vld [vmem:[#allocation5 + $0x60] sm:$0xf]
    %v120 = vld [vmem:[#allocation5 + $0x64] sm:$0xf]
    %v121 = vld [vmem:[#allocation5 + $0x68] sm:$0xf]
    %v122 = vld [vmem:[#allocation5 + $0x6c] sm:$0xf]
    %v123 = vld [vmem:[#allocation5 + $0x70] sm:$0xf]
    %v124 = vld [vmem:[#allocation5 + $0x74] sm:$0xf]
    %v125 = vld [vmem:[#allocation5 + $0x78] sm:$0xf]
    %v126 = vld [vmem:[#allocation5 + $0x7c] sm:$0xf]
    %v127 = vld [vmem:[#allocation5 + $0x80] sm:$0xf]
    %v128 = vld [vmem:[#allocation5 + $0x84] sm:$0xf]
    %v129 = vld [vmem:[#allocation5 + $0x88] sm:$0xf]
    %v130 = vld [vmem:[#allocation5 + $0x8c] sm:$0xf]
    %v131 = vld [vmem:[#allocation5 + $0x90] sm:$0xf]
    %v132 = vld [vmem:[#allocation5 + $0x94] sm:$0xf]
    %v133 = vld [vmem:[#allocation5 + $0x98] sm:$0xf]
    %v134 = vld [vmem:[#allocation5 + $0x9c] sm:$0xf]
    %v135 = vld [vmem:[#allocation5 + $0xa0] sm:$0xf]
    %v136 = vld [vmem:[#allocation5 + $0xa4] sm:$0xf]
    %v137 = vld [vmem:[#allocation5 + $0xa8] sm:$0xf]
    %v138 = vld [vmem:[#allocation5 + $0xac] sm:$0xf]
    %v139 = vld [vmem:[#allocation5 + $0xb0] sm:$0xf]
    %v140 = vld [vmem:[#allocation5 + $0xb4] sm:$0xf]
    %v141 = vld [vmem:[#allocation5 + $0xb8] sm:$0xf]
    %v142 = vld [vmem:[#allocation5 + $0xbc] sm:$0xf]
    %v143 = vld [vmem:[%s2] sm:$0x1]
    %v145 = vlaneseq
    %v146 = vshrl.u32 %v145, 7
    %v147 = vsub.s32 0, %v146
    %v148 = vrot.slane %v143, %v147
    %v182 = vunpack.c.l.b16 %v63
    %v183 = vunpack.c.h.b16 %v63
    %v184 = vunpack.c.l.b16 %v64
    %v185 = vunpack.c.l.b16 %v65
    %v186 = vunpack.c.h.b16 %v65
    %v187 = vunpack.c.l.b16 %v66
    %v188 = vunpack.c.l.b16 %v67
    %v189 = vunpack.c.h.b16 %v67
    %v190 = vunpack.c.l.b16 %v68
    %v191 = vunpack.c.l.b16 %v69
    %v192 = vunpack.c.h.b16 %v69
    %v193 = vunpack.c.l.b16 %v70
    %v194 = vunpack.c.l.b16 %v71
    %v195 = vunpack.c.h.b16 %v71
    %v196 = vunpack.c.l.b16 %v72
    %v197 = vunpack.c.l.b16 %v73
    %v198 = vunpack.c.h.b16 %v73
    %v199 = vunpack.c.l.b16 %v74
    %v200 = vunpack.c.l.b16 %v75
    %v201 = vunpack.c.h.b16 %v75
    %v202 = vunpack.c.l.b16 %v76
    %v203 = vunpack.c.l.b16 %v77
    %v204 = vunpack.c.h.b16 %v77
    %v205 = vunpack.c.l.b16 %v78
    %v206 = vunpack.c.l.b16 %v79
    %v207 = vunpack.c.h.b16 %v79
    %v208 = vunpack.c.l.b16 %v80
    %v209 = vunpack.c.l.b16 %v81
    %v210 = vunpack.c.h.b16 %v81
    %v211 = vunpack.c.l.b16 %v82
    %v212 = vunpack.c.l.b16 %v83
    %v213 = vunpack.c.h.b16 %v83
    %v214 = vunpack.c.l.b16 %v84
    %v215 = vunpack.c.l.b16 %v85
    %v216 = vunpack.c.h.b16 %v85
    %v217 = vunpack.c.l.b16 %v86
    %v218 = vunpack.c.l.b16 %v87
    %v219 = vunpack.c.h.b16 %v87
    %v220 = vunpack.c.l.b16 %v88
    %v221 = vunpack.c.l.b16 %v89
    %v222 = vunpack.c.h.b16 %v89
    %v223 = vunpack.c.l.b16 %v90
    %v224 = vunpack.c.l.b16 %v91
    %v225 = vunpack.c.h.b16 %v91
    %v226 = vunpack.c.l.b16 %v92
    %v227 = vunpack.c.l.b16 %v93
    %v228 = vunpack.c.h.b16 %v93
    %v229 = vunpack.c.l.b16 %v94
    %v230 = vpack.c.b16 %v185, %v182
    %v231 = vpack.c.b16 %v186, %v183
    %v232 = vpack.c.b16 %v187, %v184
    %v233 = vpack.c.b16 %v191, %v188
    %v234 = vpack.c.b16 %v192, %v189
    %v235 = vpack.c.b16 %v193, %v190
    %v236 = vpack.c.b16 %v197, %v194
    %v237 = vpack.c.b16 %v198, %v195
    %v238 = vpack.c.b16 %v199, %v196
    %v239 = vpack.c.b16 %v203, %v200
    %v240 = vpack.c.b16 %v204, %v201
    %v241 = vpack.c.b16 %v205, %v202
    %v242 = vpack.c.b16 %v209, %v206
    %v243 = vpack.c.b16 %v210, %v207
    %v244 = vpack.c.b16 %v211, %v208
    %v245 = vpack.c.b16 %v215, %v212
    %v246 = vpack.c.b16 %v216, %v213
    %v247 = vpack.c.b16 %v217, %v214
    %v248 = vpack.c.b16 %v221, %v218
    %v249 = vpack.c.b16 %v222, %v219
    %v250 = vpack.c.b16 %v223, %v220
    %v251 = vpack.c.b16 %v227, %v224
    %v252 = vpack.c.b16 %v228, %v225
    %v253 = vpack.c.b16 %v229, %v226
    %v326 = vunpack.c.l.b16 %v95
    %v327 = vunpack.c.l.b16 %v96
    %v328 = vunpack.c.l.b16 %v97
    %v329 = vunpack.c.l.b16 %v98
    %v330 = vunpack.c.l.b16 %v99
    %v331 = vunpack.c.l.b16 %v100
    %v332 = vunpack.c.l.b16 %v101
    %v333 = vunpack.c.l.b16 %v102
    %v334 = vunpack.c.l.b16 %v103
    %v335 = vunpack.c.l.b16 %v104
    %v336 = vunpack.c.l.b16 %v105
    %v337 = vunpack.c.l.b16 %v106
    %v338 = vunpack.c.l.b16 %v107
    %v339 = vunpack.c.l.b16 %v108
    %v340 = vunpack.c.l.b16 %v109
    %v341 = vunpack.c.l.b16 %v110
    %v342 = vunpack.c.l.b16 %v111
    %v343 = vunpack.c.l.b16 %v112
    %v344 = vunpack.c.l.b16 %v113
    %v345 = vunpack.c.l.b16 %v114
    %v346 = vunpack.c.l.b16 %v115
    %v347 = vunpack.c.l.b16 %v116
    %v348 = vunpack.c.l.b16 %v117
    %v349 = vunpack.c.l.b16 %v118
    %v350 = vunpack.c.l.b16 %v119
    %v351 = vunpack.c.l.b16 %v120
    %v352 = vunpack.c.l.b16 %v121
    %v353 = vunpack.c.l.b16 %v122
    %v354 = vunpack.c.l.b16 %v123
    %v355 = vunpack.c.l.b16 %v124
    %v356 = vunpack.c.l.b16 %v125
    %v357 = vunpack.c.l.b16 %v126
    %v358 = vunpack.c.l.b16 %v127
    %v359 = vunpack.c.l.b16 %v128
    %v360 = vunpack.c.l.b16 %v129
    %v361 = vunpack.c.l.b16 %v130
    %v362 = vunpack.c.l.b16 %v131
    %v363 = vunpack.c.l.b16 %v132
    %v364 = vunpack.c.l.b16 %v133
    %v365 = vunpack.c.l.b16 %v134
    %v366 = vunpack.c.l.b16 %v135
    %v367 = vunpack.c.l.b16 %v136
    %v368 = vunpack.c.l.b16 %v137
    %v369 = vunpack.c.l.b16 %v138
    %v370 = vunpack.c.l.b16 %v139
    %v371 = vunpack.c.l.b16 %v140
    %v372 = vunpack.c.l.b16 %v141
    %v373 = vunpack.c.l.b16 %v142
    %v374 = vpack.c.b16 %v327, %v326
    %v375 = vpack.c.b16 %v329, %v328
    %v376 = vpack.c.b16 %v331, %v330
    %v377 = vpack.c.b16 %v333, %v332
    %v378 = vpack.c.b16 %v335, %v334
    %v379 = vpack.c.b16 %v337, %v336
    %v380 = vpack.c.b16 %v339, %v338
    %v381 = vpack.c.b16 %v341, %v340
    %v382 = vpack.c.b16 %v343, %v342
    %v383 = vpack.c.b16 %v345, %v344
    %v384 = vpack.c.b16 %v347, %v346
    %v385 = vpack.c.b16 %v349, %v348
    %v386 = vpack.c.b16 %v351, %v350
    %v387 = vpack.c.b16 %v353, %v352
    %v388 = vpack.c.b16 %v355, %v354
    %v389 = vpack.c.b16 %v357, %v356
    %v390 = vpack.c.b16 %v359, %v358
    %v391 = vpack.c.b16 %v361, %v360
    %v392 = vpack.c.b16 %v363, %v362
    %v393 = vpack.c.b16 %v365, %v364
    %v394 = vpack.c.b16 %v367, %v366
    %v395 = vpack.c.b16 %v369, %v368
    %v396 = vpack.c.b16 %v371, %v370
    %v397 = vpack.c.b16 %v373, %v372
    %422 = vmatprep.subr.bf16.mxu0 0
    %423 = vmatpush1.bf16.msra.mxu0 %v381
    %424 = vmatprep.subr.bf16.mxu0 0
    %425 = vmatpush1.bf16.msra.mxu0 %v380
    %426 = vmatprep.subr.bf16.mxu0 0
    %427 = vmatpush1.bf16.msra.mxu0 %v379
    %428 = vmatprep.subr.bf16.mxu0 0
    %429 = vmatpush1.bf16.msra.mxu0 %v378
    %430 = vmatprep.subr.bf16.mxu0 0
    %431 = vmatpush1.bf16.msra.mxu0 %v377
    %432 = vmatprep.subr.bf16.mxu0 0
    %433 = vmatpush1.bf16.msra.mxu0 %v376
    %434 = vmatprep.subr.bf16.mxu0 0
    %435 = vmatpush1.bf16.msra.mxu0 %v375
    %436 = vmatprep.subr.bf16.mxu0 0
    %437 = vmatpush1.bf16.msra.mxu0 %v374
    %438 = vmatprep.subr.bf16.mxu0 0
    %439 = vmatpush2.bf16.msra.mxu0 %v389
    %440 = vmatprep.subr.bf16.mxu0 0
    %441 = vmatpush2.bf16.msra.mxu0 %v388
    %442 = vmatprep.subr.bf16.mxu0 0
    %443 = vmatpush2.bf16.msra.mxu0 %v387
    %444 = vmatprep.subr.bf16.mxu0 0
    %445 = vmatpush2.bf16.msra.mxu0 %v386
    %446 = vmatprep.subr.bf16.mxu0 0
    %447 = vmatpush2.bf16.msra.mxu0 %v385
    %448 = vmatprep.subr.bf16.mxu0 0
    %449 = vmatpush2.bf16.msra.mxu0 %v384
    %450 = vmatprep.subr.bf16.mxu0 0
    %451 = vmatpush2.bf16.msra.mxu0 %v383
    %452 = vmatprep.subr.bf16.mxu0 0
    %453 = vmatpush2.bf16.msra.mxu0 %v382
    %454 = vmatprep.mubr.bf16.mxu0 %v231
    %455 = vmatmul.mubr.bf16.gmra.mxu0 %v230
    %v456 = vpop.f32.mrf.mxu0
    %v457 = vadd.f32 %v148, %v456
    %v458 = vpop.f32.mrf.mxu0
    %v459 = vpop.f32.mrf.mxu0
    %v460 = vadd.f32 %v148, %v459
    %v461 = vpop.f32.mrf.mxu0
    %462 = vmatprep.mubr.bf16.mxu0 %v234
    %463 = vmatmul.mubr.bf16.gmra.mxu0 %v233
    %v464 = vpop.f32.mrf.mxu0
    %v465 = vadd.f32 %v148, %v464
    %v466 = vpop.f32.mrf.mxu0
    %v467 = vpop.f32.mrf.mxu0
    %v468 = vadd.f32 %v148, %v467
    %v469 = vpop.f32.mrf.mxu0
    %470 = vmatprep.mubr.bf16.mxu0 %v237
    %471 = vmatmul.mubr.bf16.gmra.mxu0 %v236
    %v472 = vpop.f32.mrf.mxu0
    %v473 = vadd.f32 %v148, %v472
    %v474 = vpop.f32.mrf.mxu0
    %v475 = vpop.f32.mrf.mxu0
    %v476 = vadd.f32 %v148, %v475
    %v477 = vpop.f32.mrf.mxu0
    %478 = vmatprep.mubr.bf16.mxu0 %v240
    %479 = vmatmul.mubr.bf16.gmra.mxu0 %v239
    %v480 = vpop.f32.mrf.mxu0
    %v481 = vadd.f32 %v148, %v480
    %v482 = vpop.f32.mrf.mxu0
    %v483 = vpop.f32.mrf.mxu0
    %v484 = vadd.f32 %v148, %v483
    %v485 = vpop.f32.mrf.mxu0
    %486 = vmatprep.mubr.bf16.mxu0 %v243
    %487 = vmatmul.mubr.bf16.gmra.mxu0 %v242
    %v488 = vpop.f32.mrf.mxu0
    %v489 = vadd.f32 %v148, %v488
    %v490 = vpop.f32.mrf.mxu0
    %v491 = vpop.f32.mrf.mxu0
    %v492 = vadd.f32 %v148, %v491
    %v493 = vpop.f32.mrf.mxu0
    %494 = vmatprep.mubr.bf16.mxu0 %v246
    %495 = vmatmul.mubr.bf16.gmra.mxu0 %v245
    %v496 = vpop.f32.mrf.mxu0
    %v497 = vadd.f32 %v148, %v496
    %v498 = vpop.f32.mrf.mxu0
    %v499 = vpop.f32.mrf.mxu0
    %v500 = vadd.f32 %v148, %v499
    %v501 = vpop.f32.mrf.mxu0
    %502 = vmatprep.mubr.bf16.mxu0 %v249
    %503 = vmatmul.mubr.bf16.gmra.mxu0 %v248
    %v504 = vpop.f32.mrf.mxu0
    %v505 = vadd.f32 %v148, %v504
    %v506 = vpop.f32.mrf.mxu0
    %v507 = vpop.f32.mrf.mxu0
    %v508 = vadd.f32 %v148, %v507
    %v509 = vpop.f32.mrf.mxu0
    %510 = vmatprep.mubr.bf16.mxu0 %v252
    %511 = vmatmul.mubr.bf16.gmra.mxu0 %v251
    %v512 = vpop.f32.mrf.mxu0
    %v513 = vadd.f32 %v148, %v512
    %v514 = vpop.f32.mrf.mxu0
    %v515 = vpop.f32.mrf.mxu0
    %v516 = vadd.f32 %v148, %v515
    %v517 = vpop.f32.mrf.mxu0
    %518 = vdwg.mxu0
    %519 = vmatprep.subr.bf16.mxu0 0
    %520 = vmatpush1.bf16.msra.mxu0 %v397
    %521 = vmatprep.subr.bf16.mxu0 0
    %522 = vmatpush1.bf16.msra.mxu0 %v396
    %523 = vmatprep.subr.bf16.mxu0 0
    %524 = vmatpush1.bf16.msra.mxu0 %v395
    %525 = vmatprep.subr.bf16.mxu0 0
    %526 = vmatpush1.bf16.msra.mxu0 %v394
    %527 = vmatprep.subr.bf16.mxu0 0
    %528 = vmatpush1.bf16.msra.mxu0 %v393
    %529 = vmatprep.subr.bf16.mxu0 0
    %530 = vmatpush1.bf16.msra.mxu0 %v392
    %531 = vmatprep.subr.bf16.mxu0 0
    %532 = vmatpush1.bf16.msra.mxu0 %v391
    %533 = vmatprep.subr.bf16.mxu0 0
    %534 = vmatpush1.bf16.msra.mxu0 %v390
    %535 = vmatprep.subr.bf16.mxu0 0
    %536 = vmatpush2.bf16.msra.mxu0 0
    %537 = vmatprep.subr.bf16.mxu0 0
    %538 = vmatpush2.bf16.msra.mxu0 0
    %539 = vmatprep.subr.bf16.mxu0 0
    %540 = vmatpush2.bf16.msra.mxu0 0
    %541 = vmatprep.subr.bf16.mxu0 0
    %542 = vmatpush2.bf16.msra.mxu0 0
    %543 = vmatprep.subr.bf16.mxu0 0
    %544 = vmatpush2.bf16.msra.mxu0 0
    %545 = vmatprep.subr.bf16.mxu0 0
    %546 = vmatpush2.bf16.msra.mxu0 0
    %547 = vmatprep.subr.bf16.mxu0 0
    %548 = vmatpush2.bf16.msra.mxu0 0
    %549 = vmatprep.subr.bf16.mxu0 0
    %550 = vmatpush2.bf16.msra.mxu0 0
    %551 = vmatprep.mubr.bf16.mxu0 0
    %552 = vmatmul.mubr.bf16.gmra.mxu0 %v232
    %v553 = vpop.f32.mrf.mxu0
    %v554 = vadd.f32 %v457, %v553
    %v555 = vpop.f32.mrf.mxu0
    %v556 = vpop.f32.mrf.mxu0
    %v557 = vadd.f32 %v460, %v556
    %v558 = vpop.f32.mrf.mxu0
    %559 = vmatprep.mubr.bf16.mxu0 0
    %560 = vmatmul.mubr.bf16.gmra.mxu0 %v235
    %v561 = vpop.f32.mrf.mxu0
    %v562 = vadd.f32 %v465, %v561
    %v563 = vpop.f32.mrf.mxu0
    %v564 = vpop.f32.mrf.mxu0
    %v565 = vadd.f32 %v468, %v564
    %v566 = vpop.f32.mrf.mxu0
    %567 = vmatprep.mubr.bf16.mxu0 0
    %568 = vmatmul.mubr.bf16.gmra.mxu0 %v238
    %v569 = vpop.f32.mrf.mxu0
    %v570 = vadd.f32 %v473, %v569
    %v571 = vpop.f32.mrf.mxu0
    %v572 = vpop.f32.mrf.mxu0
    %v573 = vadd.f32 %v476, %v572
    %v574 = vpop.f32.mrf.mxu0
    %575 = vmatprep.mubr.bf16.mxu0 0
    %576 = vmatmul.mubr.bf16.gmra.mxu0 %v241
    %v577 = vpop.f32.mrf.mxu0
    %v578 = vadd.f32 %v481, %v577
    %v579 = vpop.f32.mrf.mxu0
    %v580 = vpop.f32.mrf.mxu0
    %v581 = vadd.f32 %v484, %v580
    %v582 = vpop.f32.mrf.mxu0
    %583 = vmatprep.mubr.bf16.mxu0 0
    %584 = vmatmul.mubr.bf16.gmra.mxu0 %v244
    %v585 = vpop.f32.mrf.mxu0
    %v586 = vadd.f32 %v489, %v585
    %v587 = vpop.f32.mrf.mxu0
    %v588 = vpop.f32.mrf.mxu0
    %v589 = vadd.f32 %v492, %v588
    %v590 = vpop.f32.mrf.mxu0
    %591 = vmatprep.mubr.bf16.mxu0 0
    %592 = vmatmul.mubr.bf16.gmra.mxu0 %v247
    %v593 = vpop.f32.mrf.mxu0
    %v594 = vadd.f32 %v497, %v593
    %v595 = vpop.f32.mrf.mxu0
    %v596 = vpop.f32.mrf.mxu0
    %v597 = vadd.f32 %v500, %v596
    %v598 = vpop.f32.mrf.mxu0
    %599 = vmatprep.mubr.bf16.mxu0 0
    %600 = vmatmul.mubr.bf16.gmra.mxu0 %v250
    %v601 = vpop.f32.mrf.mxu0
    %v602 = vadd.f32 %v505, %v601
    %v603 = vpop.f32.mrf.mxu0
    %v604 = vpop.f32.mrf.mxu0
    %v605 = vadd.f32 %v508, %v604
    %v606 = vpop.f32.mrf.mxu0
    %607 = vmatprep.mubr.bf16.mxu0 0
    %608 = vmatmul.mubr.bf16.gmra.mxu0 %v253
    %v609 = vpop.f32.mrf.mxu0
    %v610 = vadd.f32 %v513, %v609
    %v611 = vpop.f32.mrf.mxu0
    %v612 = vpop.f32.mrf.mxu0
    %v613 = vadd.f32 %v516, %v612
    %v614 = vpop.f32.mrf.mxu0
    %615 = vdwg.mxu0
    %v616 = vxor.u32 %v554, 2147483648
    %v617 = vxor.u32 %v557, 2147483648
    %v618 = vxor.u32 %v562, 2147483648
    %v619 = vxor.u32 %v565, 2147483648
    %v620 = vxor.u32 %v570, 2147483648
    %v621 = vxor.u32 %v573, 2147483648
    %v622 = vxor.u32 %v578, 2147483648
    %v623 = vxor.u32 %v581, 2147483648
    %v624 = vxor.u32 %v586, 2147483648
    %v625 = vxor.u32 %v589, 2147483648
    %v626 = vxor.u32 %v594, 2147483648
    %v627 = vxor.u32 %v597, 2147483648
    %v628 = vxor.u32 %v602, 2147483648
    %v629 = vxor.u32 %v605, 2147483648
    %v630 = vxor.u32 %v610, 2147483648
    %v631 = vxor.u32 %v613, 2147483648
    %v632 = vmul.f32 %v616, 1.442695
    %v633 = vpow.pop %v632
    %v634 = vmul.f32 %v617, 1.442695
    %v635 = vpow.pop %v634
    %v636 = vmul.f32 %v618, 1.442695
    %v637 = vpow.pop %v636
    %v638 = vmul.f32 %v619, 1.442695
    %v639 = vpow.pop %v638
    %v640 = vmul.f32 %v620, 1.442695
    %v641 = vpow.pop %v640
    %v642 = vmul.f32 %v621, 1.442695
    %v643 = vpow.pop %v642
    %v644 = vmul.f32 %v622, 1.442695
    %v645 = vpow.pop %v644
    %v646 = vmul.f32 %v623, 1.442695
    %v647 = vpow.pop %v646
    %v648 = vmul.f32 %v624, 1.442695
    %v649 = vpow.pop %v648
    %v650 = vmul.f32 %v625, 1.442695
    %v651 = vpow.pop %v650
    %v652 = vmul.f32 %v626, 1.442695
    %v653 = vpow.pop %v652
    %v654 = vmul.f32 %v627, 1.442695
    %v655 = vpow.pop %v654
    %v656 = vmul.f32 %v628, 1.442695
    %v657 = vpow.pop %v656
    %v658 = vmul.f32 %v629, 1.442695
    %v659 = vpow.pop %v658
    %v660 = vmul.f32 %v630, 1.442695
    %v661 = vpow.pop %v660
    %v662 = vmul.f32 %v631, 1.442695
    %v663 = vpow.pop %v662
    %v664 = vadd.f32 %v633, 1.0
    %v665 = vadd.f32 %v635, 1.0
    %v666 = vadd.f32 %v637, 1.0
    %v667 = vadd.f32 %v639, 1.0
    %v668 = vadd.f32 %v641, 1.0
    %v669 = vadd.f32 %v643, 1.0
    %v670 = vadd.f32 %v645, 1.0
    %v671 = vadd.f32 %v647, 1.0
    %v672 = vadd.f32 %v649, 1.0
    %v673 = vadd.f32 %v651, 1.0
    %v674 = vadd.f32 %v653, 1.0
    %v675 = vadd.f32 %v655, 1.0
    %v676 = vadd.f32 %v657, 1.0
    %v677 = vadd.f32 %v659, 1.0
    %v678 = vadd.f32 %v661, 1.0
    %v679 = vadd.f32 %v663, 1.0
    %v680 = vrcp.pop %v664
    %v681 = vmul.f32 1.0, %v680
    %v682 = vrcp.pop %v665
    %v683 = vmul.f32 1.0, %v682
    %v684 = vrcp.pop %v666
    %v685 = vmul.f32 1.0, %v684
    %v686 = vrcp.pop %v667
    %v687 = vmul.f32 1.0, %v686
    %v688 = vrcp.pop %v668
    %v689 = vmul.f32 1.0, %v688
    %v690 = vrcp.pop %v669
    %v691 = vmul.f32 1.0, %v690
    %v692 = vrcp.pop %v670
    %v693 = vmul.f32 1.0, %v692
    %v694 = vrcp.pop %v671
    %v695 = vmul.f32 1.0, %v694
    %v696 = vrcp.pop %v672
    %v697 = vmul.f32 1.0, %v696
    %v698 = vrcp.pop %v673
    %v699 = vmul.f32 1.0, %v698
    %v700 = vrcp.pop %v674
    %v701 = vmul.f32 1.0, %v700
    %v702 = vrcp.pop %v675
    %v703 = vmul.f32 1.0, %v702
    %v704 = vrcp.pop %v676
    %v705 = vmul.f32 1.0, %v704
    %v706 = vrcp.pop %v677
    %v707 = vmul.f32 1.0, %v706
    %v708 = vrcp.pop %v678
    %v709 = vmul.f32 1.0, %v708
    %v710 = vrcp.pop %v679
    %v711 = vmul.f32 1.0, %v710
    %v712 = vmul.f32 %v554, %v681
    %v713 = vmul.f32 %v557, %v683
    %v714 = vmul.f32 %v562, %v685
    %v715 = vmul.f32 %v565, %v687
    %v716 = vmul.f32 %v570, %v689
    %v717 = vmul.f32 %v573, %v691
    %v718 = vmul.f32 %v578, %v693
    %v719 = vmul.f32 %v581, %v695
    %v720 = vmul.f32 %v586, %v697
    %v721 = vmul.f32 %v589, %v699
    %v722 = vmul.f32 %v594, %v701
    %v723 = vmul.f32 %v597, %v703
    %v724 = vmul.f32 %v602, %v705
    %v725 = vmul.f32 %v605, %v707
    %v726 = vmul.f32 %v610, %v709
    %v727 = vmul.f32 %v613, %v711
    %v728 = vpack.c.bf16 %v713, %v712
    %v729 = vpack.c.bf16 %v715, %v714
    %v730 = vpack.c.bf16 %v717, %v716
    %v731 = vpack.c.bf16 %v719, %v718
    %v732 = vpack.c.bf16 %v721, %v720
    %v733 = vpack.c.bf16 %v723, %v722
    %v734 = vpack.c.bf16 %v725, %v724
    %v735 = vpack.c.bf16 %v727, %v726
    %v736 = vld [vmem:[#allocation7] sm:$0xf]
    %v737 = vld [vmem:[#allocation7 + $0x4] sm:$0xf]
    %v738 = vld [vmem:[#allocation7 + $0x8] sm:$0xf]
    %v739 = vld [vmem:[#allocation7 + $0xc] sm:$0xf]
    %v740 = vld [vmem:[#allocation7 + $0x10] sm:$0xf]
    %v741 = vld [vmem:[#allocation7 + $0x14] sm:$0xf]
    %v742 = vld [vmem:[#allocation7 + $0x18] sm:$0xf]
    %v743 = vld [vmem:[#allocation7 + $0x1c] sm:$0xf]
    %v744 = vld [vmem:[#allocation7 + $0x20] sm:$0xf]
    %v745 = vld [vmem:[#allocation7 + $0x24] sm:$0xf]
    %v746 = vld [vmem:[#allocation7 + $0x28] sm:$0xf]
    %v747 = vld [vmem:[#allocation7 + $0x2c] sm:$0xf]
    %v748 = vld [vmem:[#allocation7 + $0x30] sm:$0xf]
    %v749 = vld [vmem:[#allocation7 + $0x34] sm:$0xf]
    %v750 = vld [vmem:[#allocation7 + $0x38] sm:$0xf]
    %v751 = vld [vmem:[#allocation7 + $0x3c] sm:$0xf]
    %v752 = vld [vmem:[%s4] sm:$0x1]
    %v754 = vlaneseq
    %v755 = vshrl.u32 %v754, 7
    %v756 = vsub.s32 0, %v755
    %v757 = vrot.slane %v752, %v756
    %v775 = vunpack.c.l.b16 %v736
    %v776 = vunpack.c.l.b16 %v737
    %v777 = vunpack.c.l.b16 %v738
    %v778 = vunpack.c.l.b16 %v739
    %v779 = vunpack.c.l.b16 %v740
    %v780 = vunpack.c.l.b16 %v741
    %v781 = vunpack.c.l.b16 %v742
    %v782 = vunpack.c.l.b16 %v743
    %v783 = vunpack.c.l.b16 %v744
    %v784 = vunpack.c.l.b16 %v745
    %v785 = vunpack.c.l.b16 %v746
    %v786 = vunpack.c.l.b16 %v747
    %v787 = vunpack.c.l.b16 %v748
    %v788 = vunpack.c.l.b16 %v749
    %v789 = vunpack.c.l.b16 %v750
    %v790 = vunpack.c.l.b16 %v751
    %v791 = vpack.c.b16 %v776, %v775
    %v792 = vpack.c.b16 %v778, %v777
    %v793 = vpack.c.b16 %v780, %v779
    %v794 = vpack.c.b16 %v782, %v781
    %v795 = vpack.c.b16 %v784, %v783
    %v796 = vpack.c.b16 %v786, %v785
    %v797 = vpack.c.b16 %v788, %v787
    %v798 = vpack.c.b16 %v790, %v789
    %807 = vmatprep.subr.bf16.mxu0 0
    %808 = vmatpush1.bf16.msra.mxu0 %v798
    %809 = vmatprep.subr.bf16.mxu0 0
    %810 = vmatpush1.bf16.msra.mxu0 %v797
    %811 = vmatprep.subr.bf16.mxu0 0
    %812 = vmatpush1.bf16.msra.mxu0 %v796
    %813 = vmatprep.subr.bf16.mxu0 0
    %814 = vmatpush1.bf16.msra.mxu0 %v795
    %815 = vmatprep.subr.bf16.mxu0 0
    %816 = vmatpush1.bf16.msra.mxu0 %v794
    %817 = vmatprep.subr.bf16.mxu0 0
    %818 = vmatpush1.bf16.msra.mxu0 %v793
    %819 = vmatprep.subr.bf16.mxu0 0
    %820 = vmatpush1.bf16.msra.mxu0 %v792
    %821 = vmatprep.subr.bf16.mxu0 0
    %822 = vmatpush1.bf16.msra.mxu0 %v791
    %823 = vmatprep.subr.bf16.mxu0 0
    %824 = vmatpush2.bf16.msra.mxu0 0
    %825 = vmatprep.subr.bf16.mxu0 0
    %826 = vmatpush2.bf16.msra.mxu0 0
    %827 = vmatprep.subr.bf16.mxu0 0
    %828 = vmatpush2.bf16.msra.mxu0 0
    %829 = vmatprep.subr.bf16.mxu0 0
    %830 = vmatpush2.bf16.msra.mxu0 0
    %831 = vmatprep.subr.bf16.mxu0 0
    %832 = vmatpush2.bf16.msra.mxu0 0
    %833 = vmatprep.subr.bf16.mxu0 0
    %834 = vmatpush2.bf16.msra.mxu0 0
    %835 = vmatprep.subr.bf16.mxu0 0
    %836 = vmatpush2.bf16.msra.mxu0 0
    %837 = vmatprep.subr.bf16.mxu0 0
    %838 = vmatpush2.bf16.msra.mxu0 0
    %839 = vmatprep.mubr.bf16.mxu0 0
    %840 = vmatmul.mubr.bf16.gmra.mxu0 %v728
    %v841 = vpop.f32.mrf.mxu0
    %v842 = vadd.f32 %v757, %v841
    %v843 = vpop.f32.mrf.mxu0
    %v844 = vpop.f32.mrf.mxu0
    %v845 = vadd.f32 %v757, %v844
    %v846 = vpop.f32.mrf.mxu0
    %847 = vmatprep.mubr.bf16.mxu0 0
    %848 = vmatmul.mubr.bf16.gmra.mxu0 %v729
    %v849 = vpop.f32.mrf.mxu0
    %v850 = vadd.f32 %v757, %v849
    %v851 = vpop.f32.mrf.mxu0
    %v852 = vpop.f32.mrf.mxu0
    %v853 = vadd.f32 %v757, %v852
    %v854 = vpop.f32.mrf.mxu0
    %855 = vmatprep.mubr.bf16.mxu0 0
    %856 = vmatmul.mubr.bf16.gmra.mxu0 %v730
    %v857 = vpop.f32.mrf.mxu0
    %v858 = vadd.f32 %v757, %v857
    %v859 = vpop.f32.mrf.mxu0
    %v860 = vpop.f32.mrf.mxu0
    %v861 = vadd.f32 %v757, %v860
    %v862 = vpop.f32.mrf.mxu0
    %863 = vmatprep.mubr.bf16.mxu0 0
    %864 = vmatmul.mubr.bf16.gmra.mxu0 %v731
    %v865 = vpop.f32.mrf.mxu0
    %v866 = vadd.f32 %v757, %v865
    %v867 = vpop.f32.mrf.mxu0
    %v868 = vpop.f32.mrf.mxu0
    %v869 = vadd.f32 %v757, %v868
    %v870 = vpop.f32.mrf.mxu0
    %871 = vmatprep.mubr.bf16.mxu0 0
    %872 = vmatmul.mubr.bf16.gmra.mxu0 %v732
    %v873 = vpop.f32.mrf.mxu0
    %v874 = vadd.f32 %v757, %v873
    %v875 = vpop.f32.mrf.mxu0
    %v876 = vpop.f32.mrf.mxu0
    %v877 = vadd.f32 %v757, %v876
    %v878 = vpop.f32.mrf.mxu0
    %879 = vmatprep.mubr.bf16.mxu0 0
    %880 = vmatmul.mubr.bf16.gmra.mxu0 %v733
    %v881 = vpop.f32.mrf.mxu0
    %v882 = vadd.f32 %v757, %v881
    %v883 = vpop.f32.mrf.mxu0
    %v884 = vpop.f32.mrf.mxu0
    %v885 = vadd.f32 %v757, %v884
    %v886 = vpop.f32.mrf.mxu0
    %887 = vmatprep.mubr.bf16.mxu0 0
    %888 = vmatmul.mubr.bf16.gmra.mxu0 %v734
    %v889 = vpop.f32.mrf.mxu0
    %v890 = vadd.f32 %v757, %v889
    %v891 = vpop.f32.mrf.mxu0
    %v892 = vpop.f32.mrf.mxu0
    %v893 = vadd.f32 %v757, %v892
    %v894 = vpop.f32.mrf.mxu0
    %895 = vmatprep.mubr.bf16.mxu0 0
    %896 = vmatmul.mubr.bf16.gmra.mxu0 %v735
    %v897 = vpop.f32.mrf.mxu0
    %v898 = vadd.f32 %v757, %v897
    %v899 = vpop.f32.mrf.mxu0
    %v900 = vpop.f32.mrf.mxu0
    %v901 = vadd.f32 %v757, %v900
    %v902 = vpop.f32.mrf.mxu0
    %903 = vdwg.mxu0
    %904 = vst [vmem:[#allocation8] sm:$0xff] %v842
    %905 = vst [vmem:[#allocation8 + $0x8] sm:$0xff] %v845
    %906 = vst [vmem:[#allocation8 + $0x10] sm:$0xff] %v850
    %907 = vst [vmem:[#allocation8 + $0x18] sm:$0xff] %v853
    %908 = vst [vmem:[#allocation8 + $0x20] sm:$0xff] %v858
    %909 = vst [vmem:[#allocation8 + $0x28] sm:$0xff] %v861
    %910 = vst [vmem:[#allocation8 + $0x30] sm:$0xff] %v866
    %911 = vst [vmem:[#allocation8 + $0x38] sm:$0xff] %v869
    %912 = vst [vmem:[#allocation8 + $0x40] sm:$0xff] %v874
    %913 = vst [vmem:[#allocation8 + $0x48] sm:$0xff] %v877
    %914 = vst [vmem:[#allocation8 + $0x50] sm:$0xff] %v882
    %915 = vst [vmem:[#allocation8 + $0x58] sm:$0xff] %v885
    %916 = vst [vmem:[#allocation8 + $0x60] sm:$0xff] %v890
    %917 = vst [vmem:[#allocation8 + $0x68] sm:$0xff] %v893
    %918 = vst [vmem:[#allocation8 + $0x70] sm:$0xff] %v898
    %919 = vst [vmem:[#allocation8 + $0x78] sm:$0xff] %v901
    // Predicated region
    $region34: #{tpu_custom_call.1} parent=1 // pred_check
      _
    $region35: #{tpu_custom_call.1} parent=1 // pred_check_branch
      %921 = sbr.rel (0) target = $region37
    $region36: #{tpu_custom_call.1} parent=1 // pred_region
      %s923 = ssub.s32 2048, 2048
      %924 = vsyncadd [#allocation4], %s923
      %s925 = sshll.u32 [#allocation8], 4
      %s926 = int_to_ptr.vmem [resolvable:$true] %s925
      %931 = dma.vmem_to_hbm [thread:$0]  %s926, 2048, %s5, [#allocation4], 128, 128, 8
    $region37: #{tpu_custom_call.1} parent=1 // pred_fallthru
      _
    // Predicated region
    $region38: #{tpu_custom_call.1} parent=1 // pred_check
      _
    $region39: #{tpu_custom_call.1} parent=1 // pred_check_branch
      %933 = sbr.rel (0) target = $region41
    $region40: #{tpu_custom_call.1} parent=1 // pred_region
      %934 = dma.done [#allocation4], 2048
    $region41: #{tpu_custom_call.1} parent=1 // pred_fallthru
      _
    %935 = vsyncpa [#allocation3], 1
    %936 = vsyncpa [#allocation6], 1
    %937 = vsyncpa [#allocation4], 1

</llo_original>
